<compile_context>
chip_gen: v7x
topology: tpu7x:2x2x1
jax: 0.10.0
libtpu: 0.0.40
codegen_flags: <defaults>
</compile_context>

<pallas_src>
import math

import jax
import jax.numpy as jnp
from jax.experimental import pallas as pl
from jax.experimental.pallas import tpu as pltpu


def _round_up(x, m):
    return ((x + m - 1) // m) * m


def _vmem_capacity_bytes():
    try:
        return int(pltpu.get_tpu_info().vmem_capacity_bytes)
    except Exception:
        return 64 * 1024 * 1024  # conservative: v7x per-TC capacity


# ----------------------------------------------------------------------------
# One-time parameter preparation (hoisted out of the hot path; cache result).
# ----------------------------------------------------------------------------
def prepare_proj_head_params(params, *, weight_dtype=jnp.bfloat16):
    """Pad to (8,128) tiles, fuse W1||Ws / b1||bs, cast matmul operands.

    Call once per parameter set and reuse the result across forward calls so
    the pad/concat/cast work does not re-read every weight from HBM per call.
    """
    input_dim, out_dim = params["w1"].shape
    d = _round_up(max(out_dim, 1), 128)  # lane-dense hidden/output width

    def pad2(a, rows, cols):
        return jnp.pad(a, ((0, rows - a.shape[0]), (0, cols - a.shape[1])))

    w1s = jnp.concatenate(
        [pad2(params["w1"], input_dim, d), pad2(params["ws"], input_dim, d)],
        axis=1).astype(weight_dtype)
    b1s = jnp.concatenate(
        [pad2(params["b1"], 1, d), pad2(params["bs"], 1, d)],
        axis=1).astype(jnp.float32)
    w2 = pad2(params["w2"], d, d).astype(weight_dtype)
    b2 = pad2(params["b2"], 1, d).astype(jnp.float32)
    w3 = pad2(params["w3"], d, d).astype(weight_dtype)
    b3 = pad2(params["b3"], 1, d).astype(jnp.float32)
    return {"w1s": w1s, "b1s": b1s, "w2": w2, "b2": b2, "w3": w3, "b3": b3}


# ----------------------------------------------------------------------------
# Kernel
# ----------------------------------------------------------------------------
def _projhead_kernel(x_ref, w1s_ref, b1s_ref, w2_ref, b2_ref,
                     w3_ref, b3_ref, o_ref):
    d = w2_ref.shape[0]            # lane-padded hidden/output width (128*k)
    cdt = w1s_ref.dtype            # MXU operand dtype (bf16)

    x = x_ref[...].astype(cdt)

    # Fused first-layer + shortcut projection: a single MXU pass over x.
    hs = jnp.dot(x, w1s_ref[...], preferred_element_type=jnp.float32) + b1s_ref[...]
    h = jnp.maximum(hs[:, :d], 0.0)   # block: Linear1 + ReLU   (f32 epilogue)
    s = hs[:, d:]                     # linear_shortcut         (f32)

    # Linear2 + ReLU, Linear3 + ReLU (bf16 operands, f32 accumulate + epilogue).
    h = jnp.maximum(
        jnp.dot(h.astype(cdt), w2_ref[...],
                preferred_element_type=jnp.float32) + b2_ref[...], 0.0)
    h = jnp.maximum(
        jnp.dot(h.astype(cdt), w3_ref[...],
                preferred_element_type=jnp.float32) + b3_ref[...], 0.0)

    # NOTE: out_dim <= 128 => d = 128 underfills the 256-wide v6e/v7x MXU
    # (~25% of peak per W2/W3 pass); that's structural, not a tiling issue.
    o_ref[...] = (h + s).astype(o_ref.dtype)


# ----------------------------------------------------------------------------
# Wrapper
# ----------------------------------------------------------------------------
def proj_head(x, prepped, out_dim, *, tm=None):
    """x: [N, input_dim] f32, prepped: from prepare_proj_head_params.

    Returns [N, out_dim] f32 (= PyTorch ProjHead.forward).
    """
    n, input_dim = x.shape
    w1s, b1s = prepped["w1s"], prepped["b1s"]
    w2, b2, w3, b3 = prepped["w2"], prepped["b2"], prepped["w3"], prepped["b3"]
    assert w1s.shape[0] == input_dim, "prepared params do not match x"
    d = w2.shape[0]

    # Per-generation VMEM budget / row-tile default.
    vmem_cap = _vmem_capacity_bytes()
    vmem_limit = int(min(vmem_cap - 8 * 1024 * 1024, 96 * 1024 * 1024))
    if tm is None:
        tm = 512 if vmem_cap >= 128 * 1024 * 1024 else 256

    # Ragged-N: derive the tile size from N so padding waste is <= ~8 rows per
    # tile instead of up to tm-1 fully wasted rows.
    num_tiles = pl.cdiv(n, tm)
    tm_eff = _round_up(pl.cdiv(n, num_tiles), 8)
    n_pad = num_tiles * tm_eff
    x_p = x if n_pad == n else jnp.pad(x, ((0, n_pad - n), (0, 0)))

    def resident(shape):
        # Constant block index => operand stays VMEM-resident across the grid
        # (DMA'd once).
        # TODO(synk): if the lowered MLIR shows 2 buffers per resident operand
        # on v7x (64 MiB VMEM), add pipeline_mode=pl.Buffered(1) here.
        return pl.BlockSpec(shape, lambda i: (0, 0))

    # Advisory cost hint so XLA schedules surrounding ops around the call.
    flops = 2 * n_pad * (input_dim * 2 * d + 2 * d * d)
    bytes_accessed = (
        x_p.size * x_p.dtype.itemsize
        + n_pad * d * 4
        + w1s.size * w1s.dtype.itemsize
        + w2.size * w2.dtype.itemsize
        + w3.size * w3.dtype.itemsize
        + (b1s.size + b2.size + b3.size) * 4)

    # TODO(synk): for very large input_dim (roughly > 8K on v5e/v6e, > 4K on
    # v7x's 64 MiB VMEM) add a trailing "arbitrary" K grid axis with an f32
    # VMEM accumulator for the fused x@(W1||Ws) matmul.
    out = pl.pallas_call(
        _projhead_kernel,
        out_shape=jax.ShapeDtypeStruct((n_pad, d), jnp.float32),
        grid=(num_tiles,),
        in_specs=[
            pl.BlockSpec((tm_eff, input_dim), lambda i: (i, 0)),   # x row tile
            resident((input_dim, 2 * d)), resident((1, 2 * d)),    # W1||Ws, b1||bs
            resident((d, d)), resident((1, d)),                    # W2, b2
            resident((d, d)), resident((1, d)),                    # W3, b3
        ],
        out_specs=pl.BlockSpec((tm_eff, d), lambda i: (i, 0)),
        compiler_params=pltpu.CompilerParams(
            dimension_semantics=("parallel",),   # shards row tiles across TCs (v7x)
            vmem_limit_bytes=vmem_limit,
        ),
        cost_estimate=pl.CostEstimate(
            flops=int(flops),
            transcendentals=0,
            bytes_accessed=int(bytes_accessed)),
    )(x_p, w1s, b1s, w2, b2, w3, b3)

    # On v5e (most HBM-bound) prefer consuming the padded (n_pad, d) slab
    # directly when possible; this trims to the PyTorch-visible shape.
    return out[:n, :out_dim]


# ----------------------------------------------------------------------------
# Params init + pure-JAX reference (PyTorch semantics)
# ----------------------------------------------------------------------------
def init_params(key, input_dim, out_dim):
    """Deterministic PyTorch-style (uniform +-1/sqrt(fan_in)) init."""
    ks = jax.random.split(key, 8)

    def lin(kw, kb, fan_in, fan_out):
        bound = 1.0 / math.sqrt(fan_in)
        w = jax.random.uniform(kw, (fan_in, fan_out), jnp.float32, -bound, bound)
        b = jax.random.uniform(kb, (1, fan_out), jnp.float32, -bound, bound)
        return w, b

    w1, b1 = lin(ks[0], ks[1], input_dim, out_dim)
    w2, b2 = lin(ks[2], ks[3], out_dim, out_dim)
    w3, b3 = lin(ks[4], ks[5], out_dim, out_dim)
    ws, bs = lin(ks[6], ks[7], input_dim, out_dim)
    return {"w1": w1, "b1": b1, "w2": w2, "b2": b2,
            "w3": w3, "b3": b3, "ws": ws, "bs": bs}


def proj_head_ref(x, p):
    def relu(v):
        return jnp.maximum(v, 0.0)
    h = relu(x @ p["w1"] + p["b1"])
    h = relu(h @ p["w2"] + p["b2"])
    h = relu(h @ p["w3"] + p["b3"])
    return h + (x @ p["ws"] + p["bs"])


if __name__ == "__main__":
    def run_case(key, n, input_dim, out_dim, tm=None):
        kx, kp = jax.random.split(key)
        x = jax.random.normal(kx, (n, input_dim), jnp.float32)
        params = init_params(kp, input_dim, out_dim)
        prepped = prepare_proj_head_params(params)       # one-time prep
        out = jax.block_until_ready(proj_head(x, prepped, out_dim, tm=tm))
        ref = proj_head_ref(x, params)
        assert out.shape == (n, out_dim)
        # bf16 MXU operands with f32 accumulation -> relaxed tolerance.
        rel_err = float(jnp.max(jnp.abs(out - ref)) / (jnp.max(jnp.abs(ref)) + 1e-6))
        assert rel_err < 5e-2, f"mismatch vs reference: rel err {rel_err}"

    key = jax.random.PRNGKey(0)
    k1, k2 = jax.random.split(key)
    # Small shapes per the module spec.
    run_case(k1, 8, 32, 32)
    # Ragged N, input_dim != out_dim, out_dim > 128: exercises padding, fusion
    # and the multi-tile row grid.
    run_case(k2, 300, 96, 160, tm=128)

    print("KERNEL_OK")
</pallas_src>

<mosaic_0001>
module attributes {stable_mosaic.version = 11 : i64} {
  func.func @_projhead_kernel(%arg0: i32, %arg1: memref<8x32xf32, #tpu.memory_space<vmem>>, %arg2: memref<32x256xbf16, #tpu.memory_space<vmem>>, %arg3: memref<1x256xf32, #tpu.memory_space<vmem>>, %arg4: memref<128x128xbf16, #tpu.memory_space<vmem>>, %arg5: memref<1x128xf32, #tpu.memory_space<vmem>>, %arg6: memref<128x128xbf16, #tpu.memory_space<vmem>>, %arg7: memref<1x128xf32, #tpu.memory_space<vmem>>, %arg8: memref<8x128xf32, #tpu.memory_space<vmem>>) attributes {dimension_semantics = [#tpu.dimension_semantics<parallel>], iteration_bounds = array<i64: 1>, scalar_prefetch = 0 : i64, scratch_operands = 0 : i64, tpu.core_type = #tpu.core_type<tc>, window_params = [{transform_indices = @transform_0, window_bounds = array<i64: 8, 32>}, {pipeline_mode = #tpu.pipeline_mode<synchronous>, transform_indices = @transform_1, window_bounds = array<i64: 32, 256>}, {pipeline_mode = #tpu.pipeline_mode<synchronous>, transform_indices = @transform_2, window_bounds = array<i64: 1, 256>}, {pipeline_mode = #tpu.pipeline_mode<synchronous>, transform_indices = @transform_3, window_bounds = array<i64: 128, 128>}, {pipeline_mode = #tpu.pipeline_mode<synchronous>, transform_indices = @transform_4, window_bounds = array<i64: 1, 128>}, {pipeline_mode = #tpu.pipeline_mode<synchronous>, transform_indices = @transform_5, window_bounds = array<i64: 128, 128>}, {pipeline_mode = #tpu.pipeline_mode<synchronous>, transform_indices = @transform_6, window_bounds = array<i64: 1, 128>}, {transform_indices = @transform_7, window_bounds = array<i64: 8, 128>}]} {
    %c0 = arith.constant 0 : index
    %c0_0 = arith.constant 0 : index
    %0 = vector.load %arg1[%c0, %c0_0] : memref<8x32xf32, #tpu.memory_space<vmem>>, vector<8x32xf32>
    %1 = arith.truncf %0 : vector<8x32xf32> to vector<8x32xbf16>
    %c0_1 = arith.constant 0 : index
    %c0_2 = arith.constant 0 : index
    %2 = vector.load %arg2[%c0_1, %c0_2] : memref<32x256xbf16, #tpu.memory_space<vmem>>, vector<32x256xbf16>
    %cst = arith.constant dense<0.000000e+00> : vector<8x256xf32>
    %3 = tpu.matmul %1, %2, %cst {dimension_numbers = #tpu.dot_dimension_numbers<[1], [0], [0], [1], [0, 0, 1, 1], [], []>} : vector<8x32xbf16>, vector<32x256xbf16>, vector<8x256xf32> -> vector<8x256xf32>
    %c0_3 = arith.constant 0 : index
    %c0_4 = arith.constant 0 : index
    %4 = vector.load %arg3[%c0_3, %c0_4] : memref<1x256xf32, #tpu.memory_space<vmem>>, vector<1x256xf32>
    %5 = vector.broadcast %4 : vector<1x256xf32> to vector<8x256xf32>
    %6 = arith.addf %3, %5 : vector<8x256xf32>
    %7 = vector.extract_strided_slice %6 {offsets = [0, 0], sizes = [8, 128], strides = [1, 1]} : vector<8x256xf32> to vector<8x128xf32>
    %cst_5 = arith.constant 0.000000e+00 : f32
    %8 = vector.broadcast %cst_5 : f32 to vector<8x128xf32>
    %9 = arith.maximumf %7, %8 : vector<8x128xf32>
    %10 = vector.extract_strided_slice %6 {offsets = [0, 128], sizes = [8, 128], strides = [1, 1]} : vector<8x256xf32> to vector<8x128xf32>
    %11 = arith.truncf %9 : vector<8x128xf32> to vector<8x128xbf16>
    %c0_6 = arith.constant 0 : index
    %c0_7 = arith.constant 0 : index
    %12 = vector.load %arg4[%c0_6, %c0_7] : memref<128x128xbf16, #tpu.memory_space<vmem>>, vector<128x128xbf16>
    %cst_8 = arith.constant dense<0.000000e+00> : vector<8x128xf32>
    %13 = tpu.matmul %11, %12, %cst_8 {dimension_numbers = #tpu.dot_dimension_numbers<[1], [0], [0], [1], [0, 0, 1, 1], [], []>} : vector<8x128xbf16>, vector<128x128xbf16>, vector<8x128xf32> -> vector<8x128xf32>
    %c0_9 = arith.constant 0 : index
    %c0_10 = arith.constant 0 : index
    %14 = vector.load %arg5[%c0_9, %c0_10] : memref<1x128xf32, #tpu.memory_space<vmem>>, vector<1x128xf32>
    %15 = vector.broadcast %14 : vector<1x128xf32> to vector<8x128xf32>
    %16 = arith.addf %13, %15 : vector<8x128xf32>
    %cst_11 = arith.constant 0.000000e+00 : f32
    %17 = vector.broadcast %cst_11 : f32 to vector<8x128xf32>
    %18 = arith.maximumf %16, %17 : vector<8x128xf32>
    %19 = arith.truncf %18 : vector<8x128xf32> to vector<8x128xbf16>
    %c0_12 = arith.constant 0 : index
    %c0_13 = arith.constant 0 : index
    %20 = vector.load %arg6[%c0_12, %c0_13] : memref<128x128xbf16, #tpu.memory_space<vmem>>, vector<128x128xbf16>
    %cst_14 = arith.constant dense<0.000000e+00> : vector<8x128xf32>
    %21 = tpu.matmul %19, %20, %cst_14 {dimension_numbers = #tpu.dot_dimension_numbers<[1], [0], [0], [1], [0, 0, 1, 1], [], []>} : vector<8x128xbf16>, vector<128x128xbf16>, vector<8x128xf32> -> vector<8x128xf32>
    %c0_15 = arith.constant 0 : index
    %c0_16 = arith.constant 0 : index
    %22 = vector.load %arg7[%c0_15, %c0_16] : memref<1x128xf32, #tpu.memory_space<vmem>>, vector<1x128xf32>
    %23 = vector.broadcast %22 : vector<1x128xf32> to vector<8x128xf32>
    %24 = arith.addf %21, %23 : vector<8x128xf32>
    %cst_17 = arith.constant 0.000000e+00 : f32
    %25 = vector.broadcast %cst_17 : f32 to vector<8x128xf32>
    %26 = arith.maximumf %24, %25 : vector<8x128xf32>
    %27 = arith.addf %26, %10 : vector<8x128xf32>
    %c0_18 = arith.constant 0 : index
    %c0_19 = arith.constant 0 : index
    %28 = vector.load %arg8[%c0_18, %c0_19] : memref<8x128xf32, #tpu.memory_space<vmem>>, vector<8x128xf32>
    tpu.vector_store %arg8[%c0_18, %c0_19], %27 {strides = array<i32>} : memref<8x128xf32, #tpu.memory_space<vmem>>, vector<8x128xf32>,
    return
  }
  func.func @transform_0(%arg0: i32) -> (i32, i32) {
    %c0_i32 = arith.constant 0 : i32
    %c0_i32_0 = arith.constant 0 : i32
    return %arg0, %c0_i32 : i32, i32
  }
  func.func @transform_1(%arg0: i32) -> (i32, i32) {
    %c0_i32 = arith.constant 0 : i32
    %c0_i32_0 = arith.constant 0 : i32
    %c0_i32_1 = arith.constant 0 : i32
    return %c0_i32, %c0_i32_0 : i32, i32
  }
  func.func @transform_2(%arg0: i32) -> (i32, i32) {
    %c0_i32 = arith.constant 0 : i32
    %c0_i32_0 = arith.constant 0 : i32
    %c0_i32_1 = arith.constant 0 : i32
    return %c0_i32, %c0_i32_0 : i32, i32
  }
  func.func @transform_3(%arg0: i32) -> (i32, i32) {
    %c0_i32 = arith.constant 0 : i32
    %c0_i32_0 = arith.constant 0 : i32
    %c0_i32_1 = arith.constant 0 : i32
    return %c0_i32, %c0_i32_0 : i32, i32
  }
  func.func @transform_4(%arg0: i32) -> (i32, i32) {
    %c0_i32 = arith.constant 0 : i32
    %c0_i32_0 = arith.constant 0 : i32
    %c0_i32_1 = arith.constant 0 : i32
    return %c0_i32, %c0_i32_0 : i32, i32
  }
  func.func @transform_5(%arg0: i32) -> (i32, i32) {
    %c0_i32 = arith.constant 0 : i32
    %c0_i32_0 = arith.constant 0 : i32
    %c0_i32_1 = arith.constant 0 : i32
    return %c0_i32, %c0_i32_0 : i32, i32
  }
  func.func @transform_6(%arg0: i32) -> (i32, i32) {
    %c0_i32 = arith.constant 0 : i32
    %c0_i32_0 = arith.constant 0 : i32
    %c0_i32_1 = arith.constant 0 : i32
    return %c0_i32, %c0_i32_0 : i32, i32
  }
  func.func @transform_7(%arg0: i32) -> (i32, i32) {
    %c0_i32 = arith.constant 0 : i32
    %c0_i32_0 = arith.constant 0 : i32
    return %arg0, %c0_i32 : i32, i32
  }
}

</mosaic_0001>

<llo_original>
// kernel: tpu_custom_call.1
$region0: #{tpu_custom_call.1}
  #allocation0 [shape = 'u32[]', space=smem, size = 0x4, offset = 0x4, fixed_abs, tag = 'smem constant byte address 0x4 - core index']
  #allocation1 [shape = 'u32[144,128]{1,0:T(1,128)}', space=vmem, size = 0x12000, scoped, tag = 'internal scratch']
  %s0 = inlined_call_operand.hbm [shape: f32[8,32], index: 0, kind: input, shape index: {}]
  %s1 = inlined_call_operand.hbm [shape: bf16[32,256], index: 1, kind: input, shape index: {}]
  %s2 = inlined_call_operand.vmem [shape: f32[1,256], index: 2, kind: input, shape index: {}]
  %s3 = inlined_call_operand.hbm [shape: bf16[128,128], index: 3, kind: input, shape index: {}]
  %s4 = inlined_call_operand.vmem [shape: f32[1,128], index: 4, kind: input, shape index: {}]
  %s5 = inlined_call_operand.hbm [shape: bf16[128,128], index: 5, kind: input, shape index: {}]
  %s6 = inlined_call_operand.vmem [shape: f32[1,128], index: 6, kind: input, shape index: {}]
  %s7 = inlined_call_operand.hbm [shape: f32[8,128], index: 7, kind: output, shape index: {}]
  %s8 = sld [smem:[#allocation0]]
  $region54: #{tpu_custom_call.1} parent=0
    _
  %s10 = ssub.s32 1, %s8
  %s11 = scalar_select 0, %s10, %s8
  $region1: #{tpu_custom_call.1} parent=0
    #allocation2 [shape = 'u8[4096]{0}', space=vmem, size = 0x1000, scoped, tag = 'input window, operand 0, single buffered']
    #allocation3 [shape = 's32[1]{0}', space=sflag, size = 0x4, scoped, tag = 'scoped memory for tpu_custom_call.1']
    #allocation4 [shape = 's32[1]{0}', space=sflag, size = 0x4, scoped, tag = 'scoped memory for tpu_custom_call.1']
    #allocation5 [shape = 'u8[16384]{0}', space=vmem, size = 0x4000, scoped, tag = 'input window, operand 1, single buffered']
    #allocation6 [shape = 's32[1]{0}', space=sflag, size = 0x4, scoped, tag = 'scoped memory for tpu_custom_call.1']
    #allocation7 [shape = 'u8[32768]{0}', space=vmem, size = 0x8000, scoped, tag = 'input window, operand 3, single buffered']
    #allocation8 [shape = 'u8[32768]{0}', space=vmem, size = 0x8000, scoped, tag = 'input window, operand 5, single buffered']
    #allocation9 [shape = 's32[1]{0}', space=sflag, size = 0x4, scoped, tag = 'scoped memory for tpu_custom_call.1']
    #allocation10 [shape = 'u8[4096]{0}', space=vmem, size = 0x1000, scoped, tag = 'output window, operand 0, single buffered']
    %12 = vsyncpa [#allocation3], 0
    %13 = vsyncpa [#allocation6], 0
    %14 = vsyncpa [#allocation9], 0
    %15 = vsyncpa [#allocation4], 0
    // Predicated region
    $region2: #{tpu_custom_call.1} parent=1 // pred_check
      _
    $region3: #{tpu_custom_call.1} parent=1 // pred_check_branch
      %17 = sbr.rel (0) target = $region5
    $region4: #{tpu_custom_call.1} parent=1 // pred_region
      %s19 = ssub.s32 128, 128
      %20 = vsyncadd [#allocation3], %s19
      %s22 = sshll.u32 [#allocation2], 4
      %s23 = int_to_ptr.vmem [resolvable:$true] %s22
      %25 = dma.hbm_to_vmem [thread:$0]  %s0, 128, %s23, [#allocation3]
    $region5: #{tpu_custom_call.1} parent=1 // pred_fallthru
      _
    // Predicated region
    $region6: #{tpu_custom_call.1} parent=1 // pred_check
      _
    $region7: #{tpu_custom_call.1} parent=1 // pred_check_branch
      %27 = sbr.rel (0) target = $region9
    $region8: #{tpu_custom_call.1} parent=1 // pred_region
      %s29 = ssub.s32 512, 512
      %30 = vsyncadd [#allocation6], %s29
      %s31 = sshll.u32 [#allocation5], 4
      %s32 = int_to_ptr.vmem [resolvable:$true] %s31
      %37 = dma.hbm_to_vmem [thread:$0]  %s1, 512, %s32, [#allocation6], 128, 128, 8
    $region9: #{tpu_custom_call.1} parent=1 // pred_fallthru
      _
    // Predicated region
    $region10: #{tpu_custom_call.1} parent=1 // pred_check
      _
    $region11: #{tpu_custom_call.1} parent=1 // pred_check_branch
      %39 = sbr.rel (0) target = $region13
    $region12: #{tpu_custom_call.1} parent=1 // pred_region
      _
    $region13: #{tpu_custom_call.1} parent=1 // pred_fallthru
      _
    // Predicated region
    $region14: #{tpu_custom_call.1} parent=1 // pred_check
      _
    $region15: #{tpu_custom_call.1} parent=1 // pred_check_branch
      %41 = sbr.rel (0) target = $region17
    $region16: #{tpu_custom_call.1} parent=1 // pred_region
      %s43 = ssub.s32 1024, 1024
      %44 = vsyncadd [#allocation6], %s43
      %s45 = sshll.u32 [#allocation7], 4
      %s46 = int_to_ptr.vmem [resolvable:$true] %s45
      %51 = dma.hbm_to_vmem [thread:$0]  %s3, 1024, %s46, [#allocation6], 64, 64, 4
    $region17: #{tpu_custom_call.1} parent=1 // pred_fallthru
      _
    // Predicated region
    $region18: #{tpu_custom_call.1} parent=1 // pred_check
      _
    $region19: #{tpu_custom_call.1} parent=1 // pred_check_branch
      %53 = sbr.rel (0) target = $region21
    $region20: #{tpu_custom_call.1} parent=1 // pred_region
      _
    $region21: #{tpu_custom_call.1} parent=1 // pred_fallthru
      _
    // Predicated region
    $region22: #{tpu_custom_call.1} parent=1 // pred_check
      _
    $region23: #{tpu_custom_call.1} parent=1 // pred_check_branch
      %55 = sbr.rel (0) target = $region25
    $region24: #{tpu_custom_call.1} parent=1 // pred_region
      %s57 = ssub.s32 1024, 1024
      %58 = vsyncadd [#allocation9], %s57
      %s59 = sshll.u32 [#allocation8], 4
      %s60 = int_to_ptr.vmem [resolvable:$true] %s59
      %65 = dma.hbm_to_vmem [thread:$0]  %s5, 1024, %s60, [#allocation9], 64, 64, 4
    $region25: #{tpu_custom_call.1} parent=1 // pred_fallthru
      _
    // Predicated region
    $region26: #{tpu_custom_call.1} parent=1 // pred_check
      _
    $region27: #{tpu_custom_call.1} parent=1 // pred_check_branch
      %67 = sbr.rel (0) target = $region29
    $region28: #{tpu_custom_call.1} parent=1 // pred_region
      _
    $region29: #{tpu_custom_call.1} parent=1 // pred_fallthru
      _
    // Predicated region
    $region30: #{tpu_custom_call.1} parent=1 // pred_check
      _
    $region31: #{tpu_custom_call.1} parent=1 // pred_check_branch
      %69 = sbr.rel (0) target = $region33
    $region32: #{tpu_custom_call.1} parent=1 // pred_region
      %70 = dma.done [#allocation3], 128
    $region33: #{tpu_custom_call.1} parent=1 // pred_fallthru
      _
    // Predicated region
    $region34: #{tpu_custom_call.1} parent=1 // pred_check
      _
    $region35: #{tpu_custom_call.1} parent=1 // pred_check_branch
      %72 = sbr.rel (0) target = $region37
    $region36: #{tpu_custom_call.1} parent=1 // pred_region
      %73 = dma.done [#allocation6], 512
    $region37: #{tpu_custom_call.1} parent=1 // pred_fallthru
      _
    // Predicated region
    $region38: #{tpu_custom_call.1} parent=1 // pred_check
      _
    $region39: #{tpu_custom_call.1} parent=1 // pred_check_branch
      %75 = sbr.rel (0) target = $region41
    $region40: #{tpu_custom_call.1} parent=1 // pred_region
      %76 = dma.done [#allocation6], 1024
    $region41: #{tpu_custom_call.1} parent=1 // pred_fallthru
      _
    // Predicated region
    $region42: #{tpu_custom_call.1} parent=1 // pred_check
      _
    $region43: #{tpu_custom_call.1} parent=1 // pred_check_branch
      %78 = sbr.rel (0) target = $region45
    $region44: #{tpu_custom_call.1} parent=1 // pred_region
      %79 = dma.done [#allocation9], 1024
    $region45: #{tpu_custom_call.1} parent=1 // pred_fallthru
      _
    %v81 = vld [vmem:[#allocation2] sm:$0xff]
    %v82 = vpack.c.bf16 %v81, %v81
    %v83 = vld [vmem:[#allocation5] sm:$0xff]
    %v84 = vld [vmem:[#allocation5 + $0x8] sm:$0xff]
    %v85 = vld [vmem:[#allocation5 + $0x10] sm:$0xff]
    %v86 = vld [vmem:[#allocation5 + $0x18] sm:$0xff]
    %v87 = vld [vmem:[%s2] sm:$0x3]
    %v89 = vlaneseq
    %v90 = vshrl.u32 %v89, 7
    %v91 = vsub.s32 0, %v90
    %v92 = vrot.slane %v87, %v91
    %v93 = vlaneseq
    %v94 = vshrl.u32 %v93, 7
    %v95 = vsub.s32 1, %v94
    %v96 = vrot.slane %v87, %v95
    %v103 = vunpack.c.l.b16 %v83
    %v104 = vunpack.c.h.b16 %v83
    %v105 = vunpack.c.l.b16 %v84
    %v106 = vunpack.c.h.b16 %v84
    %v107 = vunpack.c.l.b16 %v85
    %v108 = vunpack.c.h.b16 %v85
    %v109 = vunpack.c.l.b16 %v86
    %v110 = vunpack.c.h.b16 %v86
    %v111 = vpack.c.b16 %v105, %v103
    %v112 = vpack.c.b16 %v106, %v104
    %v113 = vpack.c.b16 %v109, %v107
    %v114 = vpack.c.b16 %v110, %v108
    %vm119 = vcmask 261120
    %v121 = vsel %vm119, %v82, 0
    %123 = vmatprep.subr.bf16.mxu0 %v112
    %124 = vmatpush1.bf16.msra.mxu0 %v111
    %125 = vmatprep.subr.bf16.mxu0 %v114
    %126 = vmatpush1.bf16.msra.mxu0 %v113
    %127 = vmatprep.subr.bf16.mxu0 0
    %128 = vmatpush1.bf16.msra.mxu0 0
    %129 = vmatprep.subr.bf16.mxu0 0
    %130 = vmatpush1.bf16.msra.mxu0 0
    %131 = vmatprep.subr.bf16.mxu0 0
    %132 = vmatpush1.bf16.msra.mxu0 0
    %133 = vmatprep.subr.bf16.mxu0 0
    %134 = vmatpush1.bf16.msra.mxu0 0
    %135 = vmatprep.subr.bf16.mxu0 0
    %136 = vmatpush1.bf16.msra.mxu0 0
    %137 = vmatprep.subr.bf16.mxu0 0
    %138 = vmatpush1.bf16.msra.mxu0 0
    %139 = vmatprep.subr.bf16.mxu0 0
    %140 = vmatpush1.bf16.msra.mxu0 0
    %141 = vmatprep.subr.bf16.mxu0 0
    %142 = vmatpush1.bf16.msra.mxu0 0
    %143 = vmatprep.subr.bf16.mxu0 0
    %144 = vmatpush1.bf16.msra.mxu0 0
    %145 = vmatprep.subr.bf16.mxu0 0
    %146 = vmatpush1.bf16.msra.mxu0 0
    %147 = vmatprep.subr.bf16.mxu0 0
    %148 = vmatpush1.bf16.msra.mxu0 0
    %149 = vmatprep.subr.bf16.mxu0 0
    %150 = vmatpush1.bf16.msra.mxu0 0
    %151 = vmatprep.subr.bf16.mxu0 0
    %152 = vmatpush1.bf16.msra.mxu0 0
    %153 = vmatprep.subr.bf16.mxu0 0
    %154 = vmatpush1.bf16.msra.mxu0 0
    %155 = vmatprep.mubr.bf16.mxu0 0
    %156 = vmatmul.mubr.bf16.gmra.mrb[0].mxu0 %v121
    %v157 = vpop.f32.mrb[0].mxu0
    %v158 = vadd.f32 %v92, %v157
    %v159 = vpop.f32.mrb[0].mxu0
    %v160 = vadd.f32 %v96, %v159
    %v161 = vpop.f32.mrb[0].mxu0
    %v162 = vpop.f32.mrb[0].mxu0
    %163 = vdwg.mxu0
    %v164 = vmax.f32 %v158, 0.0
    %v165 = vpack.c.bf16 %v164, %v164
    %v166 = vld [vmem:[#allocation7] sm:$0xf]
    %v167 = vld [vmem:[#allocation7 + $0x4] sm:$0xf]
    %v168 = vld [vmem:[#allocation7 + $0x8] sm:$0xf]
    %v169 = vld [vmem:[#allocation7 + $0xc] sm:$0xf]
    %v170 = vld [vmem:[#allocation7 + $0x10] sm:$0xf]
    %v171 = vld [vmem:[#allocation7 + $0x14] sm:$0xf]
    %v172 = vld [vmem:[#allocation7 + $0x18] sm:$0xf]
    %v173 = vld [vmem:[#allocation7 + $0x1c] sm:$0xf]
    %v174 = vld [vmem:[#allocation7 + $0x20] sm:$0xf]
    %v175 = vld [vmem:[#allocation7 + $0x24] sm:$0xf]
    %v176 = vld [vmem:[#allocation7 + $0x28] sm:$0xf]
    %v177 = vld [vmem:[#allocation7 + $0x2c] sm:$0xf]
    %v178 = vld [vmem:[#allocation7 + $0x30] sm:$0xf]
    %v179 = vld [vmem:[#allocation7 + $0x34] sm:$0xf]
    %v180 = vld [vmem:[#allocation7 + $0x38] sm:$0xf]
    %v181 = vld [vmem:[#allocation7 + $0x3c] sm:$0xf]
    %v182 = vld [vmem:[%s4] sm:$0x1]
    %v184 = vlaneseq
    %v185 = vshrl.u32 %v184, 7
    %v186 = vsub.s32 0, %v185
    %v187 = vrot.slane %v182, %v186
    %v205 = vunpack.c.l.b16 %v166
    %v206 = vunpack.c.l.b16 %v167
    %v207 = vunpack.c.l.b16 %v168
    %v208 = vunpack.c.l.b16 %v169
    %v209 = vunpack.c.l.b16 %v170
    %v210 = vunpack.c.l.b16 %v171
    %v211 = vunpack.c.l.b16 %v172
    %v212 = vunpack.c.l.b16 %v173
    %v213 = vunpack.c.l.b16 %v174
    %v214 = vunpack.c.l.b16 %v175
    %v215 = vunpack.c.l.b16 %v176
    %v216 = vunpack.c.l.b16 %v177
    %v217 = vunpack.c.l.b16 %v178
    %v218 = vunpack.c.l.b16 %v179
    %v219 = vunpack.c.l.b16 %v180
    %v220 = vunpack.c.l.b16 %v181
    %v221 = vpack.c.b16 %v206, %v205
    %v222 = vpack.c.b16 %v208, %v207
    %v223 = vpack.c.b16 %v210, %v209
    %v224 = vpack.c.b16 %v212, %v211
    %v225 = vpack.c.b16 %v214, %v213
    %v226 = vpack.c.b16 %v216, %v215
    %v227 = vpack.c.b16 %v218, %v217
    %v228 = vpack.c.b16 %v220, %v219
    %237 = vmatprep.subr.bf16.mxu0 0
    %238 = vmatpush1.bf16.msra.mxu0 %v221
    %239 = vmatprep.subr.bf16.mxu0 0
    %240 = vmatpush1.bf16.msra.mxu0 %v222
    %241 = vmatprep.subr.bf16.mxu0 0
    %242 = vmatpush1.bf16.msra.mxu0 %v223
    %243 = vmatprep.subr.bf16.mxu0 0
    %244 = vmatpush1.bf16.msra.mxu0 %v224
    %245 = vmatprep.subr.bf16.mxu0 0
    %246 = vmatpush1.bf16.msra.mxu0 %v225
    %247 = vmatprep.subr.bf16.mxu0 0
    %248 = vmatpush1.bf16.msra.mxu0 %v226
    %249 = vmatprep.subr.bf16.mxu0 0
    %250 = vmatpush1.bf16.msra.mxu0 %v227
    %251 = vmatprep.subr.bf16.mxu0 0
    %252 = vmatpush1.bf16.msra.mxu0 %v228
    %253 = vmatprep.subr.bf16.mxu0 0
    %254 = vmatpush1.bf16.msra.mxu0 0
    %255 = vmatprep.subr.bf16.mxu0 0
    %256 = vmatpush1.bf16.msra.mxu0 0
    %257 = vmatprep.subr.bf16.mxu0 0
    %258 = vmatpush1.bf16.msra.mxu0 0
    %259 = vmatprep.subr.bf16.mxu0 0
    %260 = vmatpush1.bf16.msra.mxu0 0
    %261 = vmatprep.subr.bf16.mxu0 0
    %262 = vmatpush1.bf16.msra.mxu0 0
    %263 = vmatprep.subr.bf16.mxu0 0
    %264 = vmatpush1.bf16.msra.mxu0 0
    %265 = vmatprep.subr.bf16.mxu0 0
    %266 = vmatpush1.bf16.msra.mxu0 0
    %267 = vmatprep.subr.bf16.mxu0 0
    %268 = vmatpush1.bf16.msra.mxu0 0
    %269 = vmatprep.mubr.bf16.mxu0 0
    %270 = vmatmul.mubr.bf16.gmra.mrb[0].mxu0 %v165
    %v271 = vpop.f32.mrb[0].mxu0
    %v272 = vadd.f32 %v187, %v271
    %v273 = vpop.f32.mrb[0].mxu0
    %v274 = vpop.f32.mrb[0].mxu0
    %v275 = vpop.f32.mrb[0].mxu0
    %276 = vdwg.mxu0
    %v277 = vmax.f32 %v272, 0.0
    %v278 = vpack.c.bf16 %v277, %v277
    %v279 = vld [vmem:[#allocation8] sm:$0xf]
    %v280 = vld [vmem:[#allocation8 + $0x4] sm:$0xf]
    %v281 = vld [vmem:[#allocation8 + $0x8] sm:$0xf]
    %v282 = vld [vmem:[#allocation8 + $0xc] sm:$0xf]
    %v283 = vld [vmem:[#allocation8 + $0x10] sm:$0xf]
    %v284 = vld [vmem:[#allocation8 + $0x14] sm:$0xf]
    %v285 = vld [vmem:[#allocation8 + $0x18] sm:$0xf]
    %v286 = vld [vmem:[#allocation8 + $0x1c] sm:$0xf]
    %v287 = vld [vmem:[#allocation8 + $0x20] sm:$0xf]
    %v288 = vld [vmem:[#allocation8 + $0x24] sm:$0xf]
    %v289 = vld [vmem:[#allocation8 + $0x28] sm:$0xf]
    %v290 = vld [vmem:[#allocation8 + $0x2c] sm:$0xf]
    %v291 = vld [vmem:[#allocation8 + $0x30] sm:$0xf]
    %v292 = vld [vmem:[#allocation8 + $0x34] sm:$0xf]
    %v293 = vld [vmem:[#allocation8 + $0x38] sm:$0xf]
    %v294 = vld [vmem:[#allocation8 + $0x3c] sm:$0xf]
    %v295 = vld [vmem:[%s6] sm:$0x1]
    %v297 = vlaneseq
    %v298 = vshrl.u32 %v297, 7
    %v299 = vsub.s32 0, %v298
    %v300 = vrot.slane %v295, %v299
    %v318 = vunpack.c.l.b16 %v279
    %v319 = vunpack.c.l.b16 %v280
    %v320 = vunpack.c.l.b16 %v281
    %v321 = vunpack.c.l.b16 %v282
    %v322 = vunpack.c.l.b16 %v283
    %v323 = vunpack.c.l.b16 %v284
    %v324 = vunpack.c.l.b16 %v285
    %v325 = vunpack.c.l.b16 %v286
    %v326 = vunpack.c.l.b16 %v287
    %v327 = vunpack.c.l.b16 %v288
    %v328 = vunpack.c.l.b16 %v289
    %v329 = vunpack.c.l.b16 %v290
    %v330 = vunpack.c.l.b16 %v291
    %v331 = vunpack.c.l.b16 %v292
    %v332 = vunpack.c.l.b16 %v293
    %v333 = vunpack.c.l.b16 %v294
    %v334 = vpack.c.b16 %v319, %v318
    %v335 = vpack.c.b16 %v321, %v320
    %v336 = vpack.c.b16 %v323, %v322
    %v337 = vpack.c.b16 %v325, %v324
    %v338 = vpack.c.b16 %v327, %v326
    %v339 = vpack.c.b16 %v329, %v328
    %v340 = vpack.c.b16 %v331, %v330
    %v341 = vpack.c.b16 %v333, %v332
    %350 = vmatprep.subr.bf16.mxu0 0
    %351 = vmatpush1.bf16.msra.mxu0 %v334
    %352 = vmatprep.subr.bf16.mxu0 0
    %353 = vmatpush1.bf16.msra.mxu0 %v335
    %354 = vmatprep.subr.bf16.mxu0 0
    %355 = vmatpush1.bf16.msra.mxu0 %v336
    %356 = vmatprep.subr.bf16.mxu0 0
    %357 = vmatpush1.bf16.msra.mxu0 %v337
    %358 = vmatprep.subr.bf16.mxu0 0
    %359 = vmatpush1.bf16.msra.mxu0 %v338
    %360 = vmatprep.subr.bf16.mxu0 0
    %361 = vmatpush1.bf16.msra.mxu0 %v339
    %362 = vmatprep.subr.bf16.mxu0 0
    %363 = vmatpush1.bf16.msra.mxu0 %v340
    %364 = vmatprep.subr.bf16.mxu0 0
    %365 = vmatpush1.bf16.msra.mxu0 %v341
    %366 = vmatprep.subr.bf16.mxu0 0
    %367 = vmatpush1.bf16.msra.mxu0 0
    %368 = vmatprep.subr.bf16.mxu0 0
    %369 = vmatpush1.bf16.msra.mxu0 0
    %370 = vmatprep.subr.bf16.mxu0 0
    %371 = vmatpush1.bf16.msra.mxu0 0
    %372 = vmatprep.subr.bf16.mxu0 0
    %373 = vmatpush1.bf16.msra.mxu0 0
    %374 = vmatprep.subr.bf16.mxu0 0
    %375 = vmatpush1.bf16.msra.mxu0 0
    %376 = vmatprep.subr.bf16.mxu0 0
    %377 = vmatpush1.bf16.msra.mxu0 0
    %378 = vmatprep.subr.bf16.mxu0 0
    %379 = vmatpush1.bf16.msra.mxu0 0
    %380 = vmatprep.subr.bf16.mxu0 0
    %381 = vmatpush1.bf16.msra.mxu0 0
    %382 = vmatprep.mubr.bf16.mxu0 0
    %383 = vmatmul.mubr.bf16.gmra.mrb[0].mxu0 %v278
    %v384 = vpop.f32.mrb[0].mxu0
    %v385 = vadd.f32 %v300, %v384
    %v386 = vpop.f32.mrb[0].mxu0
    %v387 = vpop.f32.mrb[0].mxu0
    %v388 = vpop.f32.mrb[0].mxu0
    %389 = vdwg.mxu0
    %v390 = vmax.f32 %v385, 0.0
    %v391 = vadd.f32 %v390, %v160
    %392 = vst [vmem:[#allocation10] sm:$0xff] %v391
    // Predicated region
    $region46: #{tpu_custom_call.1} parent=1 // pred_check
      _
    $region47: #{tpu_custom_call.1} parent=1 // pred_check_branch
      %394 = sbr.rel (0) target = $region49
    $region48: #{tpu_custom_call.1} parent=1 // pred_region
      %s396 = ssub.s32 128, 128
      %397 = vsyncadd [#allocation4], %s396
      %s399 = sshll.u32 [#allocation10], 4
      %s400 = int_to_ptr.vmem [resolvable:$true] %s399
      %402 = dma.vmem_to_hbm [thread:$0]  %s400, 128, %s7, [#allocation4]
    $region49: #{tpu_custom_call.1} parent=1 // pred_fallthru
      _
    // Predicated region
    $region50: #{tpu_custom_call.1} parent=1 // pred_check
      _
    $region51: #{tpu_custom_call.1} parent=1 // pred_check_branch
      %404 = sbr.rel (0) target = $region53
    $region52: #{tpu_custom_call.1} parent=1 // pred_region
      %405 = dma.done [#allocation4], 128
    $region53: #{tpu_custom_call.1} parent=1 // pred_fallthru
      _
    %406 = vsyncpa [#allocation3], 1
    %407 = vsyncpa [#allocation6], 1
    %408 = vsyncpa [#allocation9], 1
    %409 = vsyncpa [#allocation4], 1

</llo_original>
